<compile_context>
chip_gen: v7x
topology: tpu7x:2x2x1
jax: 0.10.0
libtpu: 0.0.40
codegen_flags: <defaults>
</compile_context>

<pallas_src>
import math

import jax
import jax.numpy as jnp
import numpy as np
from jax.experimental import pallas as pl
from jax.experimental.pallas import tpu as pltpu


# --------------------------------------------------------------------------- #
# Gaussian window / banded conv matrices
# --------------------------------------------------------------------------- #
def _gaussian_1d(window_size: int, sigma: float = 1.5) -> np.ndarray:
    g = np.array(
        [math.exp(-((x - window_size // 2) ** 2) / (2.0 * sigma ** 2))
         for x in range(window_size)],
        dtype=np.float64,
    )
    return (g / g.sum()).astype(np.float32)


def _band_matrices(H, W, window_size, Bc, sigma=1.5, dtype=jnp.float32):
    """Block-diagonal banded matrices implementing the zero-padded separable
    Gaussian cross-correlation used by F.conv2d(padding=window_size//2).

      column pass:  t = Wc @ a,   Wc[i, k] = g[k - i + p]   (zeros clipped at edges)
      row pass:     o = t @ Wr,   Wr[k, j] = g[k - j + p]

    Wc is replicated 5x (one per statistic channel stacked on sublanes),
    Wr is replicated Bc x (one per plane stacked on lanes).
    """
    g = _gaussian_1d(window_size, sigma)
    p = window_size // 2

    wc = np.zeros((H, H), np.float32)
    for i in range(H):
        for u in range(window_size):
            k = i + u - p
            if 0 <= k < H:
                wc[i, k] = g[u]

    wr = np.zeros((W, W), np.float32)
    for j in range(W):
        for v in range(window_size):
            k = j + v - p
            if 0 <= k < W:
                wr[k, j] = g[v]

    wc_blk = np.kron(np.eye(5, dtype=np.float32), wc)    # (5H, 5H)
    wr_blk = np.kron(np.eye(Bc, dtype=np.float32), wr)   # (Bc*W, Bc*W)
    return jnp.asarray(wc_blk, dtype), jnp.asarray(wr_blk, dtype)


# --------------------------------------------------------------------------- #
# Kernel
# --------------------------------------------------------------------------- #
def _make_kernel(H, Bc, W, matmul_dtype):
    C1 = 0.01 ** 2
    C2 = 0.03 ** 2

    def kernel(wc_ref, wr_ref, x1_ref, x2_ref, out_ref):
        # (H, Bc*W) blocks: planes stacked along lanes (lane-dense VPU work).
        a1 = x1_ref[0].astype(jnp.float32)
        a2 = x2_ref[0].astype(jnp.float32)

        # 5 statistic channels stacked along sublanes -> one (5H, Bc*W) slab.
        slab = jnp.concatenate([a1, a2, a1 * a1, a2 * a2, a1 * a2], axis=0)

        # Separable Gaussian conv of all 5 stats x Bc planes in TWO matmuls.
        t = jnp.dot(wc_ref[...], slab.astype(matmul_dtype),
                    preferred_element_type=jnp.float32)          # column pass
        g = jnp.dot(t.astype(matmul_dtype), wr_ref[...],
                    preferred_element_type=jnp.float32)          # row pass

        mu1 = g[0 * H:1 * H, :]
        mu2 = g[1 * H:2 * H, :]
        e11 = g[2 * H:3 * H, :]
        e22 = g[3 * H:4 * H, :]
        e12 = g[4 * H:5 * H, :]

        mu1_sq = mu1 * mu1
        mu2_sq = mu2 * mu2
        mu1_mu2 = mu1 * mu2
        sigma1_sq = e11 - mu1_sq
        sigma2_sq = e22 - mu2_sq
        sigma12 = e12 - mu1_mu2

        num = (2.0 * mu1_mu2 + C1) * (2.0 * sigma12 + C2)
        den = (mu1_sq + mu2_sq + C1) * (sigma1_sq + sigma2_sq + C2)
        # Exact divide keeps parity with the reference; swap to
        # num * pl.reciprocal(den, approx=True) if the VPU chain ever binds.
        ssim_map = num / den

        # Lane-dense (1, 1, Bc*W) partial sums: only the H (sublane) reduction
        # happens here; per-plane / global means finish in the wrapper.
        out_ref[...] = jnp.sum(ssim_map, axis=0, keepdims=True)[None]

    return kernel


# --------------------------------------------------------------------------- #
# Sizing heuristics (generation-aware)
# --------------------------------------------------------------------------- #
_MAX_LANES = 512  # caps block_diag(Wr) at (512, 512) f32 = 1 MiB


def _vmem_budget_bytes():
    """~80% of this generation's VMEM (v5e/v6e: 128 MiB, v7x: 64 MiB/TC)."""
    try:
        cap = int(getattr(pltpu.get_tpu_info(), "vmem_capacity_bytes",
                          64 * 1024 * 1024))
    except Exception:
        cap = 64 * 1024 * 1024   # conservative fallback (v7x per-TC VMEM)
    return int(cap * 0.8)


def _block_bytes(bc, H, W, itemsize):
    L = bc * W
    dma = 2 * 2 * H * L * itemsize               # img1/img2 blocks, double-buffered
    mats = 2 * ((5 * H) ** 2 + L * L) * 4        # band matrices (double-buffered)
    slabs = 3 * 5 * H * L * 4                    # slab / column pass / row pass (f32)
    temps = 10 * H * L * 4                       # live pointwise f32 temporaries
    outb = 2 * L * 4                             # output block, double-buffered
    return dma + mats + slabs + temps + outb


def _pick_bc(nc, H, W, itemsize, budget):
    feasible = [bc for bc in range(1, nc + 1)
                if nc % bc == 0
                and bc * W <= max(_MAX_LANES, W)
                and _block_bytes(bc, H, W, itemsize) <= budget]
    if not feasible:
        return 1
    total_bytes = 2 * nc * H * W * itemsize
    if total_bytes * 8 <= budget:
        # Tiny problem (like 16x16 planes): minimize grid steps (~0.35us each)
        # and maximize the fused matmul dimensions.
        pool = feasible
    else:
        # HBM-resident: keep >=4 steps so both v7x TCs get >=2 pipelined steps.
        pool = [bc for bc in feasible if nc // bc >= 4] or feasible
    lane_dense = [bc for bc in pool if (bc * W) % 128 == 0]
    return max(lane_dense) if lane_dense else max(pool)


# --------------------------------------------------------------------------- #
# Wrapper — matches SSIM(window_size, size_average)(img1, img2) for NCHW.
# --------------------------------------------------------------------------- #
def ssim_pallas(img1, img2, window_size=11, size_average=True,
                matmul_dtype=jnp.float32):
    N, C, H, W = img1.shape
    nc = N * C

    budget = _vmem_budget_bytes()
    itemsize = jnp.dtype(img1.dtype).itemsize
    Bc = _pick_bc(nc, H, W, itemsize, budget)
    G = nc // Bc
    L = Bc * W

    wc_blk, wr_blk = _band_matrices(H, W, window_size, Bc, dtype=matmul_dtype)

    # Lane-stack the planes: (N,C,H,W) -> (G, H, Bc*W) with plane p of group g
    # occupying lanes [p*W, (p+1)*W).  One XLA transpose over the inputs buys
    # lane-dense matmuls/VPU work in the kernel with no in-kernel relayout.
    def lane_stack(x):
        return jnp.transpose(x.reshape(G, Bc, H, W), (0, 2, 1, 3)).reshape(G, H, L)

    x1 = lane_stack(img1)
    x2 = lane_stack(img2)

    blk = _block_bytes(Bc, H, W, itemsize)
    vmem_limit = int(min(budget, max(32 * 1024 * 1024, 4 * blk)))

    col_sums = pl.pallas_call(
        _make_kernel(H, Bc, W, matmul_dtype),
        out_shape=jax.ShapeDtypeStruct((G, 1, L), jnp.float32),
        grid=(G,),
        in_specs=[
            pl.BlockSpec((5 * H, 5 * H), lambda i: (0, 0)),   # block_diag(Wc x 5)
            pl.BlockSpec((L, L), lambda i: (0, 0)),           # block_diag(Wr x Bc)
            pl.BlockSpec((1, H, L), lambda i: (i, 0, 0)),     # img1 plane group
            pl.BlockSpec((1, H, L), lambda i: (i, 0, 0)),     # img2 plane group
        ],
        out_specs=pl.BlockSpec((1, 1, L), lambda i: (i, 0, 0)),
        compiler_params=pltpu.CompilerParams(
            dimension_semantics=("parallel",),
            vmem_limit_bytes=vmem_limit),
    )(wc_blk, wr_blk, x1, x2)

    # (G, 1, Bc*W) column sums -> per-plane sums -> requested reduction.
    plane_sums = jnp.sum(col_sums.reshape(G * Bc, W), axis=-1)    # (nc,)
    if size_average:
        return jnp.sum(plane_sums) / (nc * H * W)
    return jnp.sum(plane_sums.reshape(N, C), axis=1) / (C * H * W)


# --------------------------------------------------------------------------- #
# Pure-JAX reference (mirrors the PyTorch _ssim) for validation.
# --------------------------------------------------------------------------- #
def _ssim_reference(img1, img2, window_size=11, size_average=True):
    N, C, H, W = img1.shape
    g = jnp.asarray(_gaussian_1d(window_size, 1.5))
    window = jnp.broadcast_to(jnp.outer(g, g), (C, 1, window_size, window_size))
    p = window_size // 2

    def conv(x):
        return jax.lax.conv_general_dilated(
            x, window, window_strides=(1, 1), padding=[(p, p), (p, p)],
            dimension_numbers=("NCHW", "OIHW", "NCHW"),
            feature_group_count=C, precision=jax.lax.Precision.HIGHEST)

    mu1, mu2 = conv(img1), conv(img2)
    mu1_sq, mu2_sq, mu1_mu2 = mu1 * mu1, mu2 * mu2, mu1 * mu2
    sigma1_sq = conv(img1 * img1) - mu1_sq
    sigma2_sq = conv(img2 * img2) - mu2_sq
    sigma12 = conv(img1 * img2) - mu1_mu2
    C1, C2 = 0.01 ** 2, 0.03 ** 2
    ssim_map = ((2 * mu1_mu2 + C1) * (2 * sigma12 + C2)
                / ((mu1_sq + mu2_sq + C1) * (sigma1_sq + sigma2_sq + C2)))
    if size_average:
        return ssim_map.mean()
    return ssim_map.mean(axis=(1, 2, 3))


if __name__ == "__main__":
    key = jax.random.PRNGKey(0)
    k1, k2 = jax.random.split(key)
    N, C, H, W = 2, 4, 16, 16
    img1 = jax.random.uniform(k1, (N, C, H, W), dtype=jnp.float32)
    img2 = jax.random.uniform(k2, (N, C, H, W), dtype=jnp.float32)

    out = jax.block_until_ready(ssim_pallas(img1, img2, 11, True))
    assert out.shape == ()
    assert bool(jnp.isfinite(out))
    assert -1.0 - 1e-4 <= float(out) <= 1.0 + 1e-4

    out_b = jax.block_until_ready(ssim_pallas(img1, img2, 11, False))
    assert out_b.shape == (N,)
    assert bool(jnp.all(jnp.isfinite(out_b)))

    # Validate against the pure-JAX reference (loose tolerance: summation-order
    # differences only; structural bugs would be orders of magnitude larger).
    ref = jax.block_until_ready(_ssim_reference(img1, img2, 11, True))
    ref_b = jax.block_until_ready(_ssim_reference(img1, img2, 11, False))
    assert bool(jnp.allclose(out, ref, rtol=1e-3, atol=1e-3))
    assert bool(jnp.allclose(out_b, ref_b, rtol=1e-3, atol=1e-3))

    print("KERNEL_OK")
</pallas_src>

<mosaic_0001>
module attributes {stable_mosaic.version = 11 : i64} {
  func.func @kernel(%arg0: i32, %arg1: memref<80x80xf32, #tpu.memory_space<vmem>>, %arg2: memref<128x128xf32, #tpu.memory_space<vmem>>, %arg3: memref<1x16x128xf32, #tpu.memory_space<vmem>>, %arg4: memref<1x16x128xf32, #tpu.memory_space<vmem>>, %arg5: memref<1x1x128xf32, #tpu.memory_space<vmem>>) attributes {dimension_semantics = [#tpu.dimension_semantics<parallel>], iteration_bounds = array<i64: 1>, scalar_prefetch = 0 : i64, scratch_operands = 0 : i64, tpu.core_type = #tpu.core_type<tc>, window_params = [{pipeline_mode = #tpu.pipeline_mode<synchronous>, transform_indices = @transform_0, window_bounds = array<i64: 80, 80>}, {pipeline_mode = #tpu.pipeline_mode<synchronous>, transform_indices = @transform_1, window_bounds = array<i64: 128, 128>}, {transform_indices = @transform_2, window_bounds = array<i64: 1, 16, 128>}, {transform_indices = @transform_3, window_bounds = array<i64: 1, 16, 128>}, {transform_indices = @transform_4, window_bounds = array<i64: 1, 1, 128>}]} {
    %c0 = arith.constant 0 : index
    %c0_0 = arith.constant 0 : index
    %c0_1 = arith.constant 0 : index
    %0 = vector.load %arg3[%c0, %c0_0, %c0_1] : memref<1x16x128xf32, #tpu.memory_space<vmem>>, vector<1x16x128xf32>
    %1 = vector.shape_cast %0 : vector<1x16x128xf32> to vector<16x128xf32>
    %c0_2 = arith.constant 0 : index
    %c0_3 = arith.constant 0 : index
    %c0_4 = arith.constant 0 : index
    %2 = vector.load %arg4[%c0_2, %c0_3, %c0_4] : memref<1x16x128xf32, #tpu.memory_space<vmem>>, vector<1x16x128xf32>
    %3 = vector.shape_cast %2 : vector<1x16x128xf32> to vector<16x128xf32>
    %4 = arith.mulf %1, %1 : vector<16x128xf32>
    %5 = arith.mulf %3, %3 : vector<16x128xf32>
    %6 = arith.mulf %1, %3 : vector<16x128xf32>
    %7 = tpu.concatenate %1, %3, %4, %5, %6 in 0 : vector<16x128xf32>, vector<16x128xf32>, vector<16x128xf32>, vector<16x128xf32>, vector<16x128xf32> -> vector<80x128xf32>
    %c0_5 = arith.constant 0 : index
    %c0_6 = arith.constant 0 : index
    %8 = vector.load %arg1[%c0_5, %c0_6] : memref<80x80xf32, #tpu.memory_space<vmem>>, vector<80x80xf32>
    %cst = arith.constant dense<0.000000e+00> : vector<80x128xf32>
    %9 = tpu.matmul %8, %7, %cst {dimension_numbers = #tpu.dot_dimension_numbers<[1], [0], [0], [1], [0, 0, 1, 1], [], []>} : vector<80x80xf32>, vector<80x128xf32>, vector<80x128xf32> -> vector<80x128xf32>
    %c0_7 = arith.constant 0 : index
    %c0_8 = arith.constant 0 : index
    %10 = vector.load %arg2[%c0_7, %c0_8] : memref<128x128xf32, #tpu.memory_space<vmem>>, vector<128x128xf32>
    %cst_9 = arith.constant dense<0.000000e+00> : vector<80x128xf32>
    %11 = tpu.matmul %9, %10, %cst_9 {dimension_numbers = #tpu.dot_dimension_numbers<[1], [0], [0], [1], [0, 0, 1, 1], [], []>} : vector<80x128xf32>, vector<128x128xf32>, vector<80x128xf32> -> vector<80x128xf32>
    %12 = vector.extract_strided_slice %11 {offsets = [0, 0], sizes = [16, 128], strides = [1, 1]} : vector<80x128xf32> to vector<16x128xf32>
    %13 = vector.extract_strided_slice %11 {offsets = [16, 0], sizes = [16, 128], strides = [1, 1]} : vector<80x128xf32> to vector<16x128xf32>
    %14 = vector.extract_strided_slice %11 {offsets = [32, 0], sizes = [16, 128], strides = [1, 1]} : vector<80x128xf32> to vector<16x128xf32>
    %15 = vector.extract_strided_slice %11 {offsets = [48, 0], sizes = [16, 128], strides = [1, 1]} : vector<80x128xf32> to vector<16x128xf32>
    %16 = vector.extract_strided_slice %11 {offsets = [64, 0], sizes = [16, 128], strides = [1, 1]} : vector<80x128xf32> to vector<16x128xf32>
    %17 = arith.mulf %12, %12 : vector<16x128xf32>
    %18 = arith.mulf %13, %13 : vector<16x128xf32>
    %19 = arith.mulf %12, %13 : vector<16x128xf32>
    %20 = arith.subf %14, %17 : vector<16x128xf32>
    %21 = arith.subf %15, %18 : vector<16x128xf32>
    %22 = arith.subf %16, %19 : vector<16x128xf32>
    %cst_10 = arith.constant 2.000000e+00 : f32
    %23 = vector.broadcast %cst_10 : f32 to vector<16x128xf32>
    %24 = arith.mulf %23, %19 : vector<16x128xf32>
    %cst_11 = arith.constant 9.99999974E-5 : f32
    %25 = vector.broadcast %cst_11 : f32 to vector<16x128xf32>
    %26 = arith.addf %24, %25 : vector<16x128xf32>
    %cst_12 = arith.constant 2.000000e+00 : f32
    %27 = vector.broadcast %cst_12 : f32 to vector<16x128xf32>
    %28 = arith.mulf %27, %22 : vector<16x128xf32>
    %cst_13 = arith.constant 8.99999984E-4 : f32
    %29 = vector.broadcast %cst_13 : f32 to vector<16x128xf32>
    %30 = arith.addf %28, %29 : vector<16x128xf32>
    %31 = arith.mulf %26, %30 : vector<16x128xf32>
    %32 = arith.addf %17, %18 : vector<16x128xf32>
    %cst_14 = arith.constant 9.99999974E-5 : f32
    %33 = vector.broadcast %cst_14 : f32 to vector<16x128xf32>
    %34 = arith.addf %32, %33 : vector<16x128xf32>
    %35 = arith.addf %20, %21 : vector<16x128xf32>
    %cst_15 = arith.constant 8.99999984E-4 : f32
    %36 = vector.broadcast %cst_15 : f32 to vector<16x128xf32>
    %37 = arith.addf %35, %36 : vector<16x128xf32>
    %38 = arith.mulf %34, %37 : vector<16x128xf32>
    %39 = arith.divf %31, %38 : vector<16x128xf32>
    %cst_16 = arith.constant dense<0.000000e+00> : vector<128xf32>
    %40 = vector.multi_reduction <add>, %39, %cst_16 [0] : vector<16x128xf32> to vector<128xf32>
    %41 = vector.shape_cast %40 : vector<128xf32> to vector<1x128xf32>
    %42 = vector.shape_cast %41 : vector<1x128xf32> to vector<1x1x128xf32>
    %c0_17 = arith.constant 0 : index
    %c0_18 = arith.constant 0 : index
    %c0_19 = arith.constant 0 : index
    %43 = vector.load %arg5[%c0_17, %c0_18, %c0_19] : memref<1x1x128xf32, #tpu.memory_space<vmem>>, vector<1x1x128xf32>
    tpu.vector_store %arg5[%c0_17, %c0_18, %c0_19], %42 {strides = array<i32>} : memref<1x1x128xf32, #tpu.memory_space<vmem>>, vector<1x1x128xf32>,
    return
  }
  func.func @transform_0(%arg0: i32) -> (i32, i32) {
    %c0_i32 = arith.constant 0 : i32
    %c0_i32_0 = arith.constant 0 : i32
    %c0_i32_1 = arith.constant 0 : i32
    return %c0_i32, %c0_i32_0 : i32, i32
  }
  func.func @transform_1(%arg0: i32) -> (i32, i32) {
    %c0_i32 = arith.constant 0 : i32
    %c0_i32_0 = arith.constant 0 : i32
    %c0_i32_1 = arith.constant 0 : i32
    return %c0_i32, %c0_i32_0 : i32, i32
  }
  func.func @transform_2(%arg0: i32) -> (i32, i32, i32) {
    %c0_i32 = arith.constant 0 : i32
    %c0_i32_0 = arith.constant 0 : i32
    %c0_i32_1 = arith.constant 0 : i32
    return %arg0, %c0_i32, %c0_i32_0 : i32, i32, i32
  }
  func.func @transform_3(%arg0: i32) -> (i32, i32, i32) {
    %c0_i32 = arith.constant 0 : i32
    %c0_i32_0 = arith.constant 0 : i32
    %c0_i32_1 = arith.constant 0 : i32
    return %arg0, %c0_i32, %c0_i32_0 : i32, i32, i32
  }
  func.func @transform_4(%arg0: i32) -> (i32, i32, i32) {
    %c0_i32 = arith.constant 0 : i32
    %c0_i32_0 = arith.constant 0 : i32
    %c0_i32_1 = arith.constant 0 : i32
    return %arg0, %c0_i32, %c0_i32_0 : i32, i32, i32
  }
}

</mosaic_0001>

<llo_original>
// kernel: tpu_custom_call.1
$region0: #{tpu_custom_call.1}
  #allocation0 [shape = 'u32[]', space=smem, size = 0x4, offset = 0x4, fixed_abs, tag = 'smem constant byte address 0x4 - core index']
  #allocation1 [shape = 'u32[144,128]{1,0:T(1,128)}', space=vmem, size = 0x12000, scoped, tag = 'internal scratch']
  %s0 = inlined_call_operand.hbm [shape: f32[80,80], index: 0, kind: input, shape index: {}]
  %s1 = inlined_call_operand.hbm [shape: f32[128,128], index: 1, kind: input, shape index: {}]
  %s2 = inlined_call_operand.hbm [shape: f32[1,16,128], index: 2, kind: input, shape index: {}]
  %s3 = inlined_call_operand.hbm [shape: f32[1,16,128], index: 3, kind: input, shape index: {}]
  %s4 = inlined_call_operand.hbm [shape: f32[1,1,128], index: 4, kind: output, shape index: {}]
  %s5 = sld [smem:[#allocation0]]
  $region42: #{tpu_custom_call.1} parent=0
    _
  %s7 = ssub.s32 1, %s5
  %s8 = scalar_select 0, %s7, %s5
  $region1: #{tpu_custom_call.1} parent=0
    #allocation2 [shape = 'u8[40960]{0}', space=vmem, size = 0xa000, scoped, tag = 'input window, operand 0, single buffered']
    #allocation3 [shape = 's32[1]{0}', space=sflag, size = 0x4, scoped, tag = 'scoped memory for tpu_custom_call.1']
    #allocation4 [shape = 's32[1]{0}', space=sflag, size = 0x4, scoped, tag = 'scoped memory for tpu_custom_call.1']
    #allocation5 [shape = 'u8[65536]{0}', space=vmem, size = 0x10000, scoped, tag = 'input window, operand 1, single buffered']
    #allocation6 [shape = 's32[1]{0}', space=sflag, size = 0x4, scoped, tag = 'scoped memory for tpu_custom_call.1']
    #allocation7 [shape = 'u8[8192]{0}', space=vmem, size = 0x2000, scoped, tag = 'input window, operand 2, single buffered']
    #allocation8 [shape = 'u8[8192]{0}', space=vmem, size = 0x2000, scoped, tag = 'input window, operand 3, single buffered']
    #allocation9 [shape = 's32[1]{0}', space=sflag, size = 0x4, scoped, tag = 'scoped memory for tpu_custom_call.1']
    #allocation10 [shape = 'u8[512]{0}', space=vmem, size = 0x400, scoped, tag = 'output window, operand 0, single buffered']
    %9 = vsyncpa [#allocation3], 0
    %10 = vsyncpa [#allocation6], 0
    %11 = vsyncpa [#allocation9], 0
    %12 = vsyncpa [#allocation4], 0
    // Predicated region
    $region2: #{tpu_custom_call.1} parent=1 // pred_check
      _
    $region3: #{tpu_custom_call.1} parent=1 // pred_check_branch
      %14 = sbr.rel (0) target = $region5
    $region4: #{tpu_custom_call.1} parent=1 // pred_region
      %s16 = ssub.s32 1280, 1280
      %17 = vsyncadd [#allocation3], %s16
      %s18 = sshll.u32 [#allocation2], 4
      %s19 = int_to_ptr.vmem [resolvable:$true] %s18
      %24 = dma.hbm_to_vmem [thread:$0]  %s0, 1280, %s19, [#allocation3], 128, 128, 8
    $region5: #{tpu_custom_call.1} parent=1 // pred_fallthru
      _
    // Predicated region
    $region6: #{tpu_custom_call.1} parent=1 // pred_check
      _
    $region7: #{tpu_custom_call.1} parent=1 // pred_check_branch
      %26 = sbr.rel (0) target = $region9
    $region8: #{tpu_custom_call.1} parent=1 // pred_region
      %s28 = ssub.s32 2048, 2048
      %29 = vsyncadd [#allocation6], %s28
      %s30 = sshll.u32 [#allocation5], 4
      %s31 = int_to_ptr.vmem [resolvable:$true] %s30
      %36 = dma.hbm_to_vmem [thread:$0]  %s1, 2048, %s31, [#allocation6], 128, 128, 8
    $region9: #{tpu_custom_call.1} parent=1 // pred_fallthru
      _
    // Predicated region
    $region10: #{tpu_custom_call.1} parent=1 // pred_check
      _
    $region11: #{tpu_custom_call.1} parent=1 // pred_check_branch
      %38 = sbr.rel (0) target = $region13
    $region12: #{tpu_custom_call.1} parent=1 // pred_region
      %s40 = ssub.s32 256, 256
      %41 = vsyncadd [#allocation6], %s40
      %s42 = sshll.u32 [#allocation7], 4
      %s43 = int_to_ptr.vmem [resolvable:$true] %s42
      %48 = dma.hbm_to_vmem [thread:$0]  %s2, 256, %s43, [#allocation6], 128, 128, 8
    $region13: #{tpu_custom_call.1} parent=1 // pred_fallthru
      _
    // Predicated region
    $region14: #{tpu_custom_call.1} parent=1 // pred_check
      _
    $region15: #{tpu_custom_call.1} parent=1 // pred_check_branch
      %50 = sbr.rel (0) target = $region17
    $region16: #{tpu_custom_call.1} parent=1 // pred_region
      %s52 = ssub.s32 256, 256
      %53 = vsyncadd [#allocation9], %s52
      %s54 = sshll.u32 [#allocation8], 4
      %s55 = int_to_ptr.vmem [resolvable:$true] %s54
      %60 = dma.hbm_to_vmem [thread:$0]  %s3, 256, %s55, [#allocation9], 128, 128, 8
    $region17: #{tpu_custom_call.1} parent=1 // pred_fallthru
      _
    // Predicated region
    $region18: #{tpu_custom_call.1} parent=1 // pred_check
      _
    $region19: #{tpu_custom_call.1} parent=1 // pred_check_branch
      %62 = sbr.rel (0) target = $region21
    $region20: #{tpu_custom_call.1} parent=1 // pred_region
      %63 = dma.done [#allocation3], 1280
    $region21: #{tpu_custom_call.1} parent=1 // pred_fallthru
      _
    // Predicated region
    $region22: #{tpu_custom_call.1} parent=1 // pred_check
      _
    $region23: #{tpu_custom_call.1} parent=1 // pred_check_branch
      %65 = sbr.rel (0) target = $region25
    $region24: #{tpu_custom_call.1} parent=1 // pred_region
      %66 = dma.done [#allocation6], 2048
    $region25: #{tpu_custom_call.1} parent=1 // pred_fallthru
      _
    // Predicated region
    $region26: #{tpu_custom_call.1} parent=1 // pred_check
      _
    $region27: #{tpu_custom_call.1} parent=1 // pred_check_branch
      %68 = sbr.rel (0) target = $region29
    $region28: #{tpu_custom_call.1} parent=1 // pred_region
      %69 = dma.done [#allocation6], 256
    $region29: #{tpu_custom_call.1} parent=1 // pred_fallthru
      _
    // Predicated region
    $region30: #{tpu_custom_call.1} parent=1 // pred_check
      _
    $region31: #{tpu_custom_call.1} parent=1 // pred_check_branch
      %71 = sbr.rel (0) target = $region33
    $region32: #{tpu_custom_call.1} parent=1 // pred_region
      %72 = dma.done [#allocation9], 256
    $region33: #{tpu_custom_call.1} parent=1 // pred_fallthru
      _
    %v73 = vld [vmem:[#allocation7] sm:$0xff]
    %v74 = vld [vmem:[#allocation7 + $0x8] sm:$0xff]
    %v75 = vld [vmem:[#allocation8] sm:$0xff]
    %v76 = vld [vmem:[#allocation8 + $0x8] sm:$0xff]
    %v77 = vmul.f32 %v73, %v73
    %v78 = vmul.f32 %v74, %v74
    %v79 = vmul.f32 %v75, %v75
    %v80 = vmul.f32 %v76, %v76
    %v81 = vmul.f32 %v73, %v75
    %v82 = vmul.f32 %v74, %v76
    %v83 = vld [vmem:[#allocation2] sm:$0xff]
    %v84 = vld [vmem:[#allocation2 + $0x8] sm:$0xff]
    %v85 = vld [vmem:[#allocation2 + $0x10] sm:$0xff]
    %v86 = vld [vmem:[#allocation2 + $0x18] sm:$0xff]
    %v87 = vld [vmem:[#allocation2 + $0x20] sm:$0xff]
    %v88 = vld [vmem:[#allocation2 + $0x28] sm:$0xff]
    %v89 = vld [vmem:[#allocation2 + $0x30] sm:$0xff]
    %v90 = vld [vmem:[#allocation2 + $0x38] sm:$0xff]
    %v91 = vld [vmem:[#allocation2 + $0x40] sm:$0xff]
    %v92 = vld [vmem:[#allocation2 + $0x48] sm:$0xff]
    %vm93 = vcmask 654336
    %v95 = vsel %vm93, %v83, 0
    %v98 = vsel %vm93, %v84, 0
    %v101 = vsel %vm93, %v85, 0
    %v104 = vsel %vm93, %v86, 0
    %v107 = vsel %vm93, %v87, 0
    %v110 = vsel %vm93, %v88, 0
    %v113 = vsel %vm93, %v89, 0
    %v116 = vsel %vm93, %v90, 0
    %v119 = vsel %vm93, %v91, 0
    %v122 = vsel %vm93, %v92, 0
    %124 = vmatprep.subr.mxu0 0.0
    %125 = vmatpush1.msra.mxu0 %v73
    %126 = vmatprep.subr.mxu0 0.0
    %127 = vmatpush1.msra.mxu0 %v74
    %128 = vmatprep.subr.mxu0 0.0
    %129 = vmatpush1.msra.mxu0 %v75
    %130 = vmatprep.subr.mxu0 0.0
    %131 = vmatpush1.msra.mxu0 %v76
    %132 = vmatprep.subr.mxu0 0.0
    %133 = vmatpush1.msra.mxu0 %v77
    %134 = vmatprep.subr.mxu0 0.0
    %135 = vmatpush1.msra.mxu0 %v78
    %136 = vmatprep.subr.mxu0 0.0
    %137 = vmatpush1.msra.mxu0 %v79
    %138 = vmatprep.subr.mxu0 0.0
    %139 = vmatpush1.msra.mxu0 %v80
    %140 = vmatprep.subr.mxu0 0.0
    %141 = vmatpush1.msra.mxu0 %v81
    %142 = vmatprep.subr.mxu0 0.0
    %143 = vmatpush1.msra.mxu0 %v82
    %144 = vmatprep.subr.mxu0 0.0
    %145 = vmatpush1.msra.mxu0 0.0
    %146 = vmatprep.subr.mxu0 0.0
    %147 = vmatpush1.msra.mxu0 0.0
    %148 = vmatprep.subr.mxu0 0.0
    %149 = vmatpush1.msra.mxu0 0.0
    %150 = vmatprep.subr.mxu0 0.0
    %151 = vmatpush1.msra.mxu0 0.0
    %152 = vmatprep.subr.mxu0 0.0
    %153 = vmatpush1.msra.mxu0 0.0
    %154 = vmatprep.subr.mxu0 0.0
    %155 = vmatpush1.msra.mxu0 0.0
    %156 = vmatprep.subr.mxu0 0.0
    %157 = vmatpush1.msra.mxu0 0.0
    %158 = vmatprep.subr.mxu0 0.0
    %159 = vmatpush1.msra.mxu0 0.0
    %160 = vmatprep.subr.mxu0 0.0
    %161 = vmatpush1.msra.mxu0 0.0
    %162 = vmatprep.subr.mxu0 0.0
    %163 = vmatpush1.msra.mxu0 0.0
    %164 = vmatprep.subr.mxu0 0.0
    %165 = vmatpush1.msra.mxu0 0.0
    %166 = vmatprep.subr.mxu0 0.0
    %167 = vmatpush1.msra.mxu0 0.0
    %168 = vmatprep.subr.mxu0 0.0
    %169 = vmatpush1.msra.mxu0 0.0
    %170 = vmatprep.subr.mxu0 0.0
    %171 = vmatpush1.msra.mxu0 0.0
    %172 = vmatprep.subr.mxu0 0.0
    %173 = vmatpush1.msra.mxu0 0.0
    %174 = vmatprep.subr.mxu0 0.0
    %175 = vmatpush1.msra.mxu0 0.0
    %176 = vmatprep.subr.mxu0 0.0
    %177 = vmatpush1.msra.mxu0 0.0
    %178 = vmatprep.subr.mxu0 0.0
    %179 = vmatpush1.msra.mxu0 0.0
    %180 = vmatprep.subr.mxu0 0.0
    %181 = vmatpush1.msra.mxu0 0.0
    %182 = vmatprep.subr.mxu0 0.0
    %183 = vmatpush1.msra.mxu0 0.0
    %184 = vmatprep.subr.mxu0 0.0
    %185 = vmatpush1.msra.mxu0 0.0
    %186 = vmatprep.subr.mxu0 0.0
    %187 = vmatpush1.msra.mxu0 0.0
    %188 = vmatprep.mubr.f32.mxu0 0.0
    %189 = vmatmul.mubr.f32.gmra.mrb[0].mxu0 %v95
    %v190 = vpop.f32.mrb[0].mxu0
    %v191 = vadd.f32 0.0, %v190
    %v192 = vpop.f32.mrb[0].mxu0
    %193 = vmatprep.mubr.f32.mxu0 0.0
    %194 = vmatmul.mubr.f32.gmra.mrb[0].mxu0 %v98
    %v195 = vpop.f32.mrb[0].mxu0
    %v196 = vadd.f32 0.0, %v195
    %v197 = vpop.f32.mrb[0].mxu0
    %198 = vmatprep.mubr.f32.mxu0 0.0
    %199 = vmatmul.mubr.f32.gmra.mrb[0].mxu0 %v101
    %v200 = vpop.f32.mrb[0].mxu0
    %v201 = vadd.f32 0.0, %v200
    %v202 = vpop.f32.mrb[0].mxu0
    %203 = vmatprep.mubr.f32.mxu0 0.0
    %204 = vmatmul.mubr.f32.gmra.mrb[0].mxu0 %v104
    %v205 = vpop.f32.mrb[0].mxu0
    %v206 = vadd.f32 0.0, %v205
    %v207 = vpop.f32.mrb[0].mxu0
    %208 = vmatprep.mubr.f32.mxu0 0.0
    %209 = vmatmul.mubr.f32.gmra.mrb[0].mxu0 %v107
    %v210 = vpop.f32.mrb[0].mxu0
    %v211 = vadd.f32 0.0, %v210
    %v212 = vpop.f32.mrb[0].mxu0
    %213 = vmatprep.mubr.f32.mxu0 0.0
    %214 = vmatmul.mubr.f32.gmra.mrb[0].mxu0 %v110
    %v215 = vpop.f32.mrb[0].mxu0
    %v216 = vadd.f32 0.0, %v215
    %v217 = vpop.f32.mrb[0].mxu0
    %218 = vmatprep.mubr.f32.mxu0 0.0
    %219 = vmatmul.mubr.f32.gmra.mrb[0].mxu0 %v113
    %v220 = vpop.f32.mrb[0].mxu0
    %v221 = vadd.f32 0.0, %v220
    %v222 = vpop.f32.mrb[0].mxu0
    %223 = vmatprep.mubr.f32.mxu0 0.0
    %224 = vmatmul.mubr.f32.gmra.mrb[0].mxu0 %v116
    %v225 = vpop.f32.mrb[0].mxu0
    %v226 = vadd.f32 0.0, %v225
    %v227 = vpop.f32.mrb[0].mxu0
    %228 = vmatprep.mubr.f32.mxu0 0.0
    %229 = vmatmul.mubr.f32.gmra.mrb[0].mxu0 %v119
    %v230 = vpop.f32.mrb[0].mxu0
    %v231 = vadd.f32 0.0, %v230
    %v232 = vpop.f32.mrb[0].mxu0
    %233 = vmatprep.mubr.f32.mxu0 0.0
    %234 = vmatmul.mubr.f32.gmra.mrb[0].mxu0 %v122
    %v235 = vpop.f32.mrb[0].mxu0
    %v236 = vadd.f32 0.0, %v235
    %v237 = vpop.f32.mrb[0].mxu0
    %238 = vdwg.mxu0
    %v239 = vld [vmem:[#allocation5] sm:$0xff]
    %v240 = vld [vmem:[#allocation5 + $0x8] sm:$0xff]
    %v241 = vld [vmem:[#allocation5 + $0x10] sm:$0xff]
    %v242 = vld [vmem:[#allocation5 + $0x18] sm:$0xff]
    %v243 = vld [vmem:[#allocation5 + $0x20] sm:$0xff]
    %v244 = vld [vmem:[#allocation5 + $0x28] sm:$0xff]
    %v245 = vld [vmem:[#allocation5 + $0x30] sm:$0xff]
    %v246 = vld [vmem:[#allocation5 + $0x38] sm:$0xff]
    %v247 = vld [vmem:[#allocation5 + $0x40] sm:$0xff]
    %v248 = vld [vmem:[#allocation5 + $0x48] sm:$0xff]
    %v249 = vld [vmem:[#allocation5 + $0x50] sm:$0xff]
    %v250 = vld [vmem:[#allocation5 + $0x58] sm:$0xff]
    %v251 = vld [vmem:[#allocation5 + $0x60] sm:$0xff]
    %v252 = vld [vmem:[#allocation5 + $0x68] sm:$0xff]
    %v253 = vld [vmem:[#allocation5 + $0x70] sm:$0xff]
    %v254 = vld [vmem:[#allocation5 + $0x78] sm:$0xff]
    %255 = vmatprep.subr.mxu0 0.0
    %256 = vmatpush1.msra.mxu0 %v239
    %257 = vmatprep.subr.mxu0 0.0
    %258 = vmatpush1.msra.mxu0 %v240
    %259 = vmatprep.subr.mxu0 0.0
    %260 = vmatpush1.msra.mxu0 %v241
    %261 = vmatprep.subr.mxu0 0.0
    %262 = vmatpush1.msra.mxu0 %v242
    %263 = vmatprep.subr.mxu0 0.0
    %264 = vmatpush1.msra.mxu0 %v243
    %265 = vmatprep.subr.mxu0 0.0
    %266 = vmatpush1.msra.mxu0 %v244
    %267 = vmatprep.subr.mxu0 0.0
    %268 = vmatpush1.msra.mxu0 %v245
    %269 = vmatprep.subr.mxu0 0.0
    %270 = vmatpush1.msra.mxu0 %v246
    %271 = vmatprep.subr.mxu0 0.0
    %272 = vmatpush1.msra.mxu0 %v247
    %273 = vmatprep.subr.mxu0 0.0
    %274 = vmatpush1.msra.mxu0 %v248
    %275 = vmatprep.subr.mxu0 0.0
    %276 = vmatpush1.msra.mxu0 %v249
    %277 = vmatprep.subr.mxu0 0.0
    %278 = vmatpush1.msra.mxu0 %v250
    %279 = vmatprep.subr.mxu0 0.0
    %280 = vmatpush1.msra.mxu0 %v251
    %281 = vmatprep.subr.mxu0 0.0
    %282 = vmatpush1.msra.mxu0 %v252
    %283 = vmatprep.subr.mxu0 0.0
    %284 = vmatpush1.msra.mxu0 %v253
    %285 = vmatprep.subr.mxu0 0.0
    %286 = vmatpush1.msra.mxu0 %v254
    %287 = vmatprep.subr.mxu0 0.0
    %288 = vmatpush1.msra.mxu0 0.0
    %289 = vmatprep.subr.mxu0 0.0
    %290 = vmatpush1.msra.mxu0 0.0
    %291 = vmatprep.subr.mxu0 0.0
    %292 = vmatpush1.msra.mxu0 0.0
    %293 = vmatprep.subr.mxu0 0.0
    %294 = vmatpush1.msra.mxu0 0.0
    %295 = vmatprep.subr.mxu0 0.0
    %296 = vmatpush1.msra.mxu0 0.0
    %297 = vmatprep.subr.mxu0 0.0
    %298 = vmatpush1.msra.mxu0 0.0
    %299 = vmatprep.subr.mxu0 0.0
    %300 = vmatpush1.msra.mxu0 0.0
    %301 = vmatprep.subr.mxu0 0.0
    %302 = vmatpush1.msra.mxu0 0.0
    %303 = vmatprep.subr.mxu0 0.0
    %304 = vmatpush1.msra.mxu0 0.0
    %305 = vmatprep.subr.mxu0 0.0
    %306 = vmatpush1.msra.mxu0 0.0
    %307 = vmatprep.subr.mxu0 0.0
    %308 = vmatpush1.msra.mxu0 0.0
    %309 = vmatprep.subr.mxu0 0.0
    %310 = vmatpush1.msra.mxu0 0.0
    %311 = vmatprep.subr.mxu0 0.0
    %312 = vmatpush1.msra.mxu0 0.0
    %313 = vmatprep.subr.mxu0 0.0
    %314 = vmatpush1.msra.mxu0 0.0
    %315 = vmatprep.subr.mxu0 0.0
    %316 = vmatpush1.msra.mxu0 0.0
    %317 = vmatprep.subr.mxu0 0.0
    %318 = vmatpush1.msra.mxu0 0.0
    %319 = vmatprep.mubr.f32.mxu0 0.0
    %320 = vmatmul.mubr.f32.gmra.mrb[0].mxu0 %v191
    %v321 = vpop.f32.mrb[0].mxu0
    %v322 = vadd.f32 0.0, %v321
    %v323 = vpop.f32.mrb[0].mxu0
    %324 = vmatprep.mubr.f32.mxu0 0.0
    %325 = vmatmul.mubr.f32.gmra.mrb[0].mxu0 %v196
    %v326 = vpop.f32.mrb[0].mxu0
    %v327 = vadd.f32 0.0, %v326
    %v328 = vpop.f32.mrb[0].mxu0
    %329 = vmatprep.mubr.f32.mxu0 0.0
    %330 = vmatmul.mubr.f32.gmra.mrb[0].mxu0 %v201
    %v331 = vpop.f32.mrb[0].mxu0
    %v332 = vadd.f32 0.0, %v331
    %v333 = vpop.f32.mrb[0].mxu0
    %334 = vmatprep.mubr.f32.mxu0 0.0
    %335 = vmatmul.mubr.f32.gmra.mrb[0].mxu0 %v206
    %v336 = vpop.f32.mrb[0].mxu0
    %v337 = vadd.f32 0.0, %v336
    %v338 = vpop.f32.mrb[0].mxu0
    %339 = vmatprep.mubr.f32.mxu0 0.0
    %340 = vmatmul.mubr.f32.gmra.mrb[0].mxu0 %v211
    %v341 = vpop.f32.mrb[0].mxu0
    %v342 = vadd.f32 0.0, %v341
    %v343 = vpop.f32.mrb[0].mxu0
    %344 = vmatprep.mubr.f32.mxu0 0.0
    %345 = vmatmul.mubr.f32.gmra.mrb[0].mxu0 %v216
    %v346 = vpop.f32.mrb[0].mxu0
    %v347 = vadd.f32 0.0, %v346
    %v348 = vpop.f32.mrb[0].mxu0
    %349 = vmatprep.mubr.f32.mxu0 0.0
    %350 = vmatmul.mubr.f32.gmra.mrb[0].mxu0 %v221
    %v351 = vpop.f32.mrb[0].mxu0
    %v352 = vadd.f32 0.0, %v351
    %v353 = vpop.f32.mrb[0].mxu0
    %354 = vmatprep.mubr.f32.mxu0 0.0
    %355 = vmatmul.mubr.f32.gmra.mrb[0].mxu0 %v226
    %v356 = vpop.f32.mrb[0].mxu0
    %v357 = vadd.f32 0.0, %v356
    %v358 = vpop.f32.mrb[0].mxu0
    %359 = vmatprep.mubr.f32.mxu0 0.0
    %360 = vmatmul.mubr.f32.gmra.mrb[0].mxu0 %v231
    %v361 = vpop.f32.mrb[0].mxu0
    %v362 = vadd.f32 0.0, %v361
    %v363 = vpop.f32.mrb[0].mxu0
    %364 = vmatprep.mubr.f32.mxu0 0.0
    %365 = vmatmul.mubr.f32.gmra.mrb[0].mxu0 %v236
    %v366 = vpop.f32.mrb[0].mxu0
    %v367 = vadd.f32 0.0, %v366
    %v368 = vpop.f32.mrb[0].mxu0
    %369 = vdwg.mxu0
    %v370 = vmul.f32 %v322, %v322
    %v371 = vmul.f32 %v327, %v327
    %v372 = vmul.f32 %v332, %v332
    %v373 = vmul.f32 %v337, %v337
    %v374 = vmul.f32 %v322, %v332
    %v375 = vmul.f32 %v327, %v337
    %v376 = vsub.f32 %v342, %v370
    %v377 = vsub.f32 %v347, %v371
    %v378 = vsub.f32 %v352, %v372
    %v379 = vsub.f32 %v357, %v373
    %v380 = vsub.f32 %v362, %v374
    %v381 = vsub.f32 %v367, %v375
    %v382 = vmul.f32 %v374, 2.0
    %v383 = vmul.f32 %v375, 2.0
    %v384 = vadd.f32 %v382, 0.0001
    %v385 = vadd.f32 %v383, 0.0001
    %v386 = vmul.f32 %v380, 2.0
    %v387 = vmul.f32 %v381, 2.0
    %v388 = vadd.f32 %v386, 0.0009
    %v389 = vadd.f32 %v387, 0.0009
    %v390 = vmul.f32 %v384, %v388
    %v391 = vmul.f32 %v385, %v389
    %v392 = vadd.f32 %v370, %v372
    %v393 = vadd.f32 %v371, %v373
    %v394 = vadd.f32 %v392, 0.0001
    %v395 = vadd.f32 %v393, 0.0001
    %v396 = vadd.f32 %v376, %v378
    %v397 = vadd.f32 %v377, %v379
    %v398 = vadd.f32 %v396, 0.0009
    %v399 = vadd.f32 %v397, 0.0009
    %v400 = vmul.f32 %v394, %v398
    %v401 = vmul.f32 %v395, %v399
    %v402 = vrcp.pop %v400
    %v403 = vmul.f32 %v390, %v402
    %v404 = vrcp.pop %v401
    %v405 = vmul.f32 %v391, %v404
    %v406 = vadd.f32 %v403, %v405
    %v407 = vrot.slane %v406, 4
    %v408 = vadd.f32 %v406, %v407
    %v409 = vrot.slane %v408, 2
    %v410 = vadd.f32 %v408, %v409
    %v411 = vrot.slane %v410, 1
    %v412 = vadd.f32 %v410, %v411
    %413 = vst [vmem:[#allocation10] sm:$0x1] %v412
    // Predicated region
    $region34: #{tpu_custom_call.1} parent=1 // pred_check
      _
    $region35: #{tpu_custom_call.1} parent=1 // pred_check_branch
      %415 = sbr.rel (0) target = $region37
    $region36: #{tpu_custom_call.1} parent=1 // pred_region
      %s417 = ssub.s32 16, 16
      %418 = vsyncadd [#allocation4], %s417
      %s420 = sshll.u32 [#allocation10], 4
      %s421 = int_to_ptr.vmem [resolvable:$true] %s420
      %423 = dma.vmem_to_hbm [thread:$0]  %s421, 16, %s4, [#allocation4]
    $region37: #{tpu_custom_call.1} parent=1 // pred_fallthru
      _
    // Predicated region
    $region38: #{tpu_custom_call.1} parent=1 // pred_check
      _
    $region39: #{tpu_custom_call.1} parent=1 // pred_check_branch
      %425 = sbr.rel (0) target = $region41
    $region40: #{tpu_custom_call.1} parent=1 // pred_region
      %426 = dma.done [#allocation4], 16
    $region41: #{tpu_custom_call.1} parent=1 // pred_fallthru
      _
    %427 = vsyncpa [#allocation3], 1
    %428 = vsyncpa [#allocation6], 1
    %429 = vsyncpa [#allocation9], 1
    %430 = vsyncpa [#allocation4], 1

</llo_original>
